<compile_context>
chip_gen: v5e
topology: v5e:2x2
jax: 0.10.0
libtpu: 0.0.40
codegen_flags: <defaults>
</compile_context>

<pallas_src>
import functools
import math

import jax
import jax.numpy as jnp
from jax.experimental import pallas as pl
from jax.experimental.pallas import tpu as pltpu

_VMEM_LIMIT = 32 * 1024 * 1024


def _round_up(x, m):
    return (x + m - 1) // m * m


def _pad_to(a, shape):
    pads = [(0, t - s) for s, t in zip(a.shape, shape)]
    if all(p == (0, 0) for p in pads):
        return a
    return jnp.pad(a, pads)


# ----------------------------------------------------------------------------
# Fused tiled matmul + folded-BN affine (+ optional residual) (+ activation)
# ----------------------------------------------------------------------------
def _mm_kernel(*refs, act, has_res):
    if has_res:
        x_ref, w_ref, scale_ref, bias_ref, res_ref, o_ref, acc_ref = refs
    else:
        x_ref, w_ref, scale_ref, bias_ref, o_ref, acc_ref = refs
        res_ref = None
    k = pl.program_id(2)

    @pl.when(k == 0)
    def _():
        acc_ref[...] = jnp.zeros_like(acc_ref)

    acc_ref[...] += jnp.dot(x_ref[...], w_ref[...],
                            preferred_element_type=jnp.float32)

    @pl.when(k == pl.num_programs(2) - 1)
    def _():
        y = acc_ref[...] * scale_ref[...] + bias_ref[...]
        if has_res:
            y = y + res_ref[...].astype(jnp.float32)
        if act == "relu6":
            y = jnp.clip(y, 0.0, 6.0)
        elif act == "sigmoid":
            y = jax.nn.sigmoid(y)
        o_ref[...] = y.astype(o_ref.dtype)


def matmul_affine(x, w, scale, bias, residual=None, act="none",
                  out_dtype=jnp.bfloat16):
    """act((x @ w) * scale + bias (+ residual)).  bf16 MXU, f32 epilogue."""
    M, K = x.shape
    N = w.shape[1]
    has_res = residual is not None

    # --- tile selection: sublane-aligned M/K, lane-dense (128-mult) N -------
    TM = _round_up(M, 8) if M <= 256 else 256
    Mp = _round_up(M, TM)

    Np = _round_up(N, 128)
    if Np <= 640:
        TN = Np
    elif Np % 512 == 0:
        TN = 512
    elif Np % 256 == 0:
        TN = 256
    else:
        TN = 128

    Kp8 = _round_up(K, 8)
    if Kp8 <= 512:
        TK = Kp = Kp8
    else:
        Kp = _round_up(K, 128)
        if Kp % 512 == 0:
            TK = 512
        elif Kp % 256 == 0:
            TK = 256
        else:
            TK = 128

    xb = _pad_to(x.astype(jnp.bfloat16), (Mp, Kp))
    wb = _pad_to(w.astype(jnp.bfloat16), (Kp, Np))
    sc = _pad_to(scale.reshape(1, N).astype(jnp.float32), (1, Np))
    bi = _pad_to(bias.reshape(1, N).astype(jnp.float32), (1, Np))

    operands = [xb, wb, sc, bi]
    in_specs = [
        pl.BlockSpec((TM, TK), lambda i, j, k: (i, k)),
        pl.BlockSpec((TK, TN), lambda i, j, k: (k, j)),
        pl.BlockSpec((1, TN), lambda i, j, k: (0, j)),
        pl.BlockSpec((1, TN), lambda i, j, k: (0, j)),
    ]
    if has_res:
        operands.append(_pad_to(residual.astype(jnp.bfloat16), (Mp, Np)))
        in_specs.append(pl.BlockSpec((TM, TN), lambda i, j, k: (i, j)))

    out = pl.pallas_call(
        functools.partial(_mm_kernel, act=act, has_res=has_res),
        out_shape=jax.ShapeDtypeStruct((Mp, Np), out_dtype),
        grid_spec=pltpu.PrefetchScalarGridSpec(
            num_scalar_prefetch=0,
            grid=(Mp // TM, Np // TN, Kp // TK),
            in_specs=in_specs,
            out_specs=pl.BlockSpec((TM, TN), lambda i, j, k: (i, j)),
            scratch_shapes=[pltpu.VMEM((TM, TN), jnp.float32)],
        ),
        compiler_params=pltpu.CompilerParams(
            dimension_semantics=("parallel", "parallel", "arbitrary"),
            vmem_limit_bytes=_VMEM_LIMIT,
        ),
    )(*operands)
    return out[:M, :N]


# ----------------------------------------------------------------------------
# Depthwise 3x3 + folded-BN + ReLU6 (VPU, taps formed in-kernel, no 9x HBM)
# ----------------------------------------------------------------------------
def _dw_kernel(*refs, taps, n_phase):
    phase_refs = refs[:n_phase]
    w_ref, scale_ref, bias_ref, o_ref = refs[n_phase:]
    _, Ho, Wo, _ = o_ref.shape
    phases = [r[0].astype(jnp.float32) for r in phase_refs]
    acc = None
    for t, (p, oy, ox) in enumerate(taps):
        term = phases[p][oy:oy + Ho, ox:ox + Wo, :] * w_ref[t]
        acc = term if acc is None else acc + term
    y = acc * scale_ref[...] + bias_ref[...]
    y = jnp.clip(y, 0.0, 6.0)
    o_ref[0] = y.astype(o_ref.dtype)


def depthwise3x3_bn_relu6(x, w, scale, bias, stride):
    """x: [B,H,W,C] NHWC bf16; w: [9,C] taps in (dy,dx) row-major order."""
    B, H, W, C = x.shape
    Ho = (H + 2 - 3) // stride + 1
    Wo = (W + 2 - 3) // stride + 1
    xp = jnp.pad(x, ((0, 0), (1, 1), (1, 1), (0, 0)))

    if stride == 1:
        phases = [xp]
        taps = [(0, dy, dx) for dy in range(3) for dx in range(3)]
    else:  # stride == 2: 2x2 polyphase split (still only 1x activation volume)
        Hp = xp.shape[1] + (xp.shape[1] % 2)
        Wp = xp.shape[2] + (xp.shape[2] % 2)
        xp = _pad_to(xp, (B, Hp, Wp, C))
        phases = [xp[:, p::2, q::2, :] for p in range(2) for q in range(2)]
        taps = [((dy % 2) * 2 + (dx % 2), dy // 2, dx // 2)
                for dy in range(3) for dx in range(3)]

    n_phase = len(phases)
    operands, in_specs = [], []
    for ph in phases:
        operands.append(ph.astype(jnp.bfloat16))
        in_specs.append(pl.BlockSpec((1,) + ph.shape[1:],
                                     lambda b: (b, 0, 0, 0)))
    operands += [
        w.reshape(9, 1, 1, C).astype(jnp.float32),
        scale.reshape(1, 1, C).astype(jnp.float32),
        bias.reshape(1, 1, C).astype(jnp.float32),
    ]
    in_specs += [
        pl.BlockSpec((9, 1, 1, C), lambda b: (0, 0, 0, 0)),
        pl.BlockSpec((1, 1, C), lambda b: (0, 0, 0)),
        pl.BlockSpec((1, 1, C), lambda b: (0, 0, 0)),
    ]

    return pl.pallas_call(
        functools.partial(_dw_kernel, taps=tuple(taps), n_phase=n_phase),
        out_shape=jax.ShapeDtypeStruct((B, Ho, Wo, C), jnp.bfloat16),
        grid_spec=pltpu.PrefetchScalarGridSpec(
            num_scalar_prefetch=0,
            grid=(B,),
            in_specs=in_specs,
            out_specs=pl.BlockSpec((1, Ho, Wo, C), lambda b: (b, 0, 0, 0)),
        ),
        compiler_params=pltpu.CompilerParams(
            dimension_semantics=("parallel",),
            vmem_limit_bytes=_VMEM_LIMIT,
        ),
    )(*operands)


# ----------------------------------------------------------------------------
# Global-average-pool + Linear(1280,1) + Sigmoid fused (VPU dot + lane reduce)
# ----------------------------------------------------------------------------
def _gap_fc_kernel(x_ref, w_ref, b_ref, o_ref):
    feat = jnp.mean(x_ref[...].astype(jnp.float32), axis=1)        # [B, C]
    logit = jnp.sum(feat * w_ref[...], axis=-1, keepdims=True)      # [B, 1]
    o_ref[...] = jax.nn.sigmoid(logit + b_ref[...])


def gap_fc_sigmoid(x, fc_w, fc_b):
    """x: [B, HW, C] bf16 -> sigmoid(mean_HW(x) @ fc_w + fc_b) as [B, 1] f32."""
    B, HW, C = x.shape
    return pl.pallas_call(
        _gap_fc_kernel,
        out_shape=jax.ShapeDtypeStruct((B, 1), jnp.float32),
        in_specs=[pl.BlockSpec(memory_space=pltpu.MemorySpace.VMEM)] * 3,
        out_specs=pl.BlockSpec(memory_space=pltpu.MemorySpace.VMEM),
    )(x.astype(jnp.bfloat16),
      fc_w.astype(jnp.float32).reshape(1, C),
      fc_b.astype(jnp.float32).reshape(1, 1))


# ----------------------------------------------------------------------------
# MobileNetV2 parameter construction (deterministic synthetic weights)
# ----------------------------------------------------------------------------
_IR_SETTING = [  # (expand t, out channels c, repeats n, stride s)
    (1, 16, 1, 1),
    (6, 24, 2, 2),
    (6, 32, 3, 2),
    (6, 64, 4, 2),
    (6, 96, 3, 1),
    (6, 160, 3, 2),
    (6, 320, 1, 1),
]


def init_params(key):
    counter = [0]

    def nk():
        counter[0] += 1
        return jax.random.fold_in(key, counter[0])

    def bn(c):  # folded BN: scale = gamma/sqrt(var+eps), bias = beta - mean*scale
        return (1.0 + 0.05 * jax.random.normal(nk(), (c,), jnp.float32),
                0.05 * jax.random.normal(nk(), (c,), jnp.float32))

    def wmat(cin, cout):
        return jax.random.normal(nk(), (cin, cout), jnp.float32) / math.sqrt(cin)

    params = {}
    # stem: Conv2d(3, 32, 3, s=2, pad=1, bias=False) + BN + ReLU6 (im2col K=27)
    params["stem_w"] = wmat(27, 32)
    params["stem_scale"], params["stem_bias"] = bn(32)

    blocks = []
    cin = 32
    for t, c, n, s in _IR_SETTING:
        for i in range(n):
            stride = s if i == 0 else 1
            hidden = cin * t
            blk = {"stride": stride,
                   "use_res": (stride == 1 and cin == c),
                   "expand": (t != 1)}
            if t != 1:
                blk["expand_w"] = wmat(cin, hidden)
                blk["expand_scale"], blk["expand_bias"] = bn(hidden)
            blk["dw_w"] = jax.random.normal(nk(), (9, hidden), jnp.float32) / 3.0
            blk["dw_scale"], blk["dw_bias"] = bn(hidden)
            blk["proj_w"] = wmat(hidden, c)
            blk["proj_scale"], blk["proj_bias"] = bn(c)
            blocks.append(blk)
            cin = c
    params["blocks"] = blocks

    # head: Conv2d(320, 1280, 1) + BN + ReLU6
    params["head_w"] = wmat(320, 1280)
    params["head_scale"], params["head_bias"] = bn(1280)

    # classifier: Dropout(0.2) [eval: identity] + Linear(1280, 1, bias=True)
    params["fc_w"] = wmat(1280, 1)
    params["fc_b"] = jnp.zeros((1,), jnp.float32)
    return params


# ----------------------------------------------------------------------------
# Forward pass (== FireClassifier.forward)
# ----------------------------------------------------------------------------
def _im2col_3x3(x, stride):
    """3x3/pad1 im2col for the stem conv: [B,H,W,Cin] -> [B*Ho*Wo, 9*Cin]."""
    # TODO(synk): move the stem im2col inside a halo-tiled Pallas kernel.
    B, H, W, C = x.shape
    xp = jnp.pad(x, ((0, 0), (1, 1), (1, 1), (0, 0)))
    Ho = (H + 2 - 3) // stride + 1
    Wo = (W + 2 - 3) // stride + 1
    cols = []
    for dy in range(3):
        for dx in range(3):
            cols.append(
                xp[:, dy:dy + (Ho - 1) * stride + 1:stride,
                      dx:dx + (Wo - 1) * stride + 1:stride, :]
            )
    cols = jnp.concatenate(cols, axis=-1)  # [B, Ho, Wo, 9*Cin]
    return cols.reshape(B * Ho * Wo, 9 * C), Ho, Wo


def fire_classifier_forward(params, x_nchw):
    # layout: NCHW (PyTorch) -> NHWC for TPU, bf16 activations on the wire
    x = jnp.transpose(x_nchw, (0, 2, 3, 1)).astype(jnp.bfloat16)
    B = x.shape[0]

    # ---- stem conv (3x3, s2) as im2col + fused tiled Pallas matmul ----
    cols, Ho, Wo = _im2col_3x3(x, stride=2)     # K=27 padded to 32 inside
    y = matmul_affine(cols, params["stem_w"], params["stem_scale"],
                      params["stem_bias"], act="relu6")
    x = y.reshape(B, Ho, Wo, -1)

    # ---- inverted residual blocks ----
    # TODO(synk): fuse expand->depthwise->project per block so the expanded
    # hidden tensor stays in VMEM instead of round-tripping through HBM.
    for blk in params["blocks"]:
        inp = x
        h = x
        if blk["expand"]:
            Bh, Hh, Wh, Ch = h.shape
            h = matmul_affine(h.reshape(-1, Ch), blk["expand_w"],
                              blk["expand_scale"], blk["expand_bias"],
                              act="relu6").reshape(Bh, Hh, Wh, -1)
        h = depthwise3x3_bn_relu6(h, blk["dw_w"], blk["dw_scale"],
                                  blk["dw_bias"], blk["stride"])
        Bh, Hh, Wh, Ch = h.shape
        res = inp.reshape(Bh * Hh * Wh, -1) if blk["use_res"] else None
        x = matmul_affine(h.reshape(-1, Ch), blk["proj_w"],
                          blk["proj_scale"], blk["proj_bias"],
                          residual=res, act="none").reshape(Bh, Hh, Wh, -1)

    # ---- head 1x1 conv ----
    Bh, Hh, Wh, Ch = x.shape
    x = matmul_affine(x.reshape(-1, Ch), params["head_w"], params["head_scale"],
                      params["head_bias"], act="relu6")

    # ---- GAP + Linear(1280,1) + sigmoid1 fused in one Pallas kernel ----
    out = gap_fc_sigmoid(x.reshape(Bh, Hh * Wh, -1),
                         params["fc_w"], params["fc_b"])   # [B, 1] f32

    # x.squeeze(1)
    return out[:, 0]

    # TODO(synk): self.lstm / self.dense2 / self.sigmoid2 are defined in
    # __init__ but never used in forward(); intentionally not implemented.


# ----------------------------------------------------------------------------
if __name__ == "__main__":
    key = jax.random.PRNGKey(0)
    params = init_params(jax.random.fold_in(key, 1))
    # Small, MobileNetV2-compatible input: batch=2, 3 channels, 32x32 (NCHW).
    x = jax.random.normal(jax.random.fold_in(key, 2), (2, 3, 32, 32), jnp.float32)

    out = fire_classifier_forward(params, x)
    out = jax.block_until_ready(out)

    assert out.shape == (2,), out.shape
    assert out.dtype == jnp.float32
    assert bool(jnp.all((out >= 0.0) & (out <= 1.0)))
    print("KERNEL_OK")
</pallas_src>

<mosaic_0001>
module attributes {stable_mosaic.version = 11 : i64} {
  func.func @_mm_kernel(%arg0: i32, %arg1: i32, %arg2: i32, %arg3: memref<256x32xbf16, #tpu.memory_space<vmem>>, %arg4: memref<32x128xbf16, #tpu.memory_space<vmem>>, %arg5: memref<1x128xf32, #tpu.memory_space<vmem>>, %arg6: memref<1x128xf32, #tpu.memory_space<vmem>>, %arg7: memref<256x128xbf16, #tpu.memory_space<vmem>>, %arg8: memref<256x128xf32, #tpu.memory_space<vmem>>) attributes {dimension_semantics = [#tpu.dimension_semantics<parallel>, #tpu.dimension_semantics<parallel>, #tpu.dimension_semantics<arbitrary>], iteration_bounds = array<i64: 2, 1, 1>, scalar_prefetch = 0 : i64, scratch_operands = 1 : i64, tpu.core_type = #tpu.core_type<tc>, window_params = [{transform_indices = @transform_0, window_bounds = array<i64: 256, 32>}, {transform_indices = @transform_1, window_bounds = array<i64: 32, 128>}, {transform_indices = @transform_2, window_bounds = array<i64: 1, 128>}, {transform_indices = @transform_3, window_bounds = array<i64: 1, 128>}, {transform_indices = @transform_4, window_bounds = array<i64: 256, 128>}]} {
    %c0_i32 = arith.constant 0 : i32
    %0 = arith.cmpi eq, %arg2, %c0_i32 : i32
    %1 = arith.extui %0 : i1 to i32
    %c0_i32_0 = arith.constant 0 : i32
    %2 = arith.cmpi ne, %1, %c0_i32_0 : i32
    scf.if %2 {
      %cst_10 = arith.constant 0.000000e+00 : f32
      %12 = vector.broadcast %cst_10 : f32 to vector<256x128xf32>
      %c0_11 = arith.constant 0 : index
      %c0_12 = arith.constant 0 : index
      %13 = vector.load %arg8[%c0_11, %c0_12] : memref<256x128xf32, #tpu.memory_space<vmem>>, vector<256x128xf32>
      tpu.vector_store %arg8[%c0_11, %c0_12], %12 {strides = array<i32>} : memref<256x128xf32, #tpu.memory_space<vmem>>, vector<256x128xf32>,
    } else {
    }
    %c0 = arith.constant 0 : index
    %c0_1 = arith.constant 0 : index
    %3 = vector.load %arg8[%c0, %c0_1] : memref<256x128xf32, #tpu.memory_space<vmem>>, vector<256x128xf32>
    %c0_2 = arith.constant 0 : index
    %c0_3 = arith.constant 0 : index
    %4 = vector.load %arg3[%c0_2, %c0_3] : memref<256x32xbf16, #tpu.memory_space<vmem>>, vector<256x32xbf16>
    %c0_4 = arith.constant 0 : index
    %c0_5 = arith.constant 0 : index
    %5 = vector.load %arg4[%c0_4, %c0_5] : memref<32x128xbf16, #tpu.memory_space<vmem>>, vector<32x128xbf16>
    %cst = arith.constant dense<0.000000e+00> : vector<256x128xf32>
    %6 = tpu.matmul %4, %5, %cst {dimension_numbers = #tpu.dot_dimension_numbers<[1], [0], [0], [1], [0, 0, 1, 1], [], []>} : vector<256x32xbf16>, vector<32x128xbf16>, vector<256x128xf32> -> vector<256x128xf32>
    %7 = arith.addf %3, %6 : vector<256x128xf32>
    %c0_6 = arith.constant 0 : index
    %c0_7 = arith.constant 0 : index
    %8 = vector.load %arg8[%c0_6, %c0_7] : memref<256x128xf32, #tpu.memory_space<vmem>>, vector<256x128xf32>
    tpu.vector_store %arg8[%c0_6, %c0_7], %7 {strides = array<i32>} : memref<256x128xf32, #tpu.memory_space<vmem>>, vector<256x128xf32>,
    %c0_i32_8 = arith.constant 0 : i32
    %9 = arith.cmpi eq, %arg2, %c0_i32_8 : i32
    %10 = arith.extui %9 : i1 to i32
    %c0_i32_9 = arith.constant 0 : i32
    %11 = arith.cmpi ne, %10, %c0_i32_9 : i32
    scf.if %11 {
      %c0_10 = arith.constant 0 : index
      %c0_11 = arith.constant 0 : index
      %12 = vector.load %arg8[%c0_10, %c0_11] : memref<256x128xf32, #tpu.memory_space<vmem>>, vector<256x128xf32>
      %c0_12 = arith.constant 0 : index
      %c0_13 = arith.constant 0 : index
      %13 = vector.load %arg5[%c0_12, %c0_13] : memref<1x128xf32, #tpu.memory_space<vmem>>, vector<1x128xf32>
      %14 = vector.broadcast %13 : vector<1x128xf32> to vector<256x128xf32>
      %15 = arith.mulf %12, %14 : vector<256x128xf32>
      %c0_14 = arith.constant 0 : index
      %c0_15 = arith.constant 0 : index
      %16 = vector.load %arg6[%c0_14, %c0_15] : memref<1x128xf32, #tpu.memory_space<vmem>>, vector<1x128xf32>
      %17 = vector.broadcast %16 : vector<1x128xf32> to vector<256x128xf32>
      %18 = arith.addf %15, %17 : vector<256x128xf32>
      %cst_16 = arith.constant 0.000000e+00 : f32
      %cst_17 = arith.constant 6.000000e+00 : f32
      %19 = vector.broadcast %cst_16 : f32 to vector<256x128xf32>
      %20 = arith.maximumf %19, %18 : vector<256x128xf32>
      %21 = vector.broadcast %cst_17 : f32 to vector<256x128xf32>
      %22 = arith.minimumf %21, %20 : vector<256x128xf32>
      %23 = arith.truncf %22 : vector<256x128xf32> to vector<256x128xbf16>
      %c0_18 = arith.constant 0 : index
      %c0_19 = arith.constant 0 : index
      %24 = vector.load %arg7[%c0_18, %c0_19] : memref<256x128xbf16, #tpu.memory_space<vmem>>, vector<256x128xbf16>
      tpu.vector_store %arg7[%c0_18, %c0_19], %23 {strides = array<i32>} : memref<256x128xbf16, #tpu.memory_space<vmem>>, vector<256x128xbf16>,
    } else {
    }
    return
  }
  func.func @transform_0(%arg0: i32, %arg1: i32, %arg2: i32) -> (i32, i32) {
    %c0_i32 = arith.constant 0 : i32
    return %arg0, %arg2 : i32, i32
  }
  func.func @transform_1(%arg0: i32, %arg1: i32, %arg2: i32) -> (i32, i32) {
    %c0_i32 = arith.constant 0 : i32
    return %arg2, %arg1 : i32, i32
  }
  func.func @transform_2(%arg0: i32, %arg1: i32, %arg2: i32) -> (i32, i32) {
    %c0_i32 = arith.constant 0 : i32
    %c0_i32_0 = arith.constant 0 : i32
    return %c0_i32, %arg1 : i32, i32
  }
  func.func @transform_3(%arg0: i32, %arg1: i32, %arg2: i32) -> (i32, i32) {
    %c0_i32 = arith.constant 0 : i32
    %c0_i32_0 = arith.constant 0 : i32
    return %c0_i32, %arg1 : i32, i32
  }
  func.func @transform_4(%arg0: i32, %arg1: i32, %arg2: i32) -> (i32, i32) {
    %c0_i32 = arith.constant 0 : i32
    return %arg0, %arg1 : i32, i32
  }
}

</mosaic_0001>

<llo_original>
// kernel: tpu_custom_call.1
$region0: #{tpu_custom_call.1}
  #allocation0 [shape = 'u32[]', space=smem, size = 0x4, offset = 0x4, fixed_abs, tag = 'smem constant byte address 0x4 - core index']
  #allocation1 [shape = 'u32[72,128]{1,0:T(1,128)}', space=vmem, size = 0x9000, scoped, tag = 'internal scratch']
  #allocation2 [shape = 'f32[256,128]{1,0:T(8,128)}', space=vmem, size = 0x20000, scoped, tag = 'scratch operand']
  %s0 = inlined_call_operand.vmem [shape: bf16[512,32], index: 0, kind: input, shape index: {}]
  %s1 = inlined_call_operand.vmem [shape: bf16[32,128], index: 1, kind: input, shape index: {}]
  %s2 = inlined_call_operand.vmem [shape: f32[1,128], index: 2, kind: input, shape index: {}]
  %s3 = inlined_call_operand.vmem [shape: f32[1,128], index: 3, kind: input, shape index: {}]
  %s4 = inlined_call_operand.hbm [shape: bf16[512,128], index: 4, kind: output, shape index: {}]
  %s5 = sld [smem:[#allocation0]]
  $region57: #{tpu_custom_call.1} parent=0
    _
  %s7 = ssub.s32 1, %s5
  %s8 = scalar_select 0, %s7, %s5
  $region1: #{tpu_custom_call.1} parent=0
    #allocation3 [shape = 'u8[131072]{0}', space=vmem, size = 0x20000, scoped, tag = 'output window, operand 0']
    #allocation4 [shape = 's32[2]{0}', space=sflag, size = 0x8, scoped, tag = 'scoped memory for tpu_custom_call.1']
    %9 = vsyncpa [#allocation4], 0
    %s10 = scalar_lea.sflag [#allocation4], 1
    %11 = vsyncpa %s10, 0
    loop: start=0, step=1, limit=4
    $region2: #{tpu_custom_call.1} parent=1 // loop_pre_header
      _
    $region3: #{tpu_custom_call.1} parent=1 // loop_header
      %s13 = sphi 0, %s17
      %p14 = scmp.ge.s32.totalorder %s13, 4
      %s20 = sphi 0, %s39
      %s21 = sphi 0, %s35
      %s22 = sphi 0, %s31
      %s23 = sphi 0, %s20
      %s24 = sphi 0, %s21
      %s25 = sphi 0, %s22
      %s26 = sphi 0, %s23
      %s27 = sphi 0, %s24
      %s28 = sphi 0, %s25
      %s44 = sphi 0, %s46
      %s47 = sphi 0, %s44
      %s48 = sphi 0, %s47
      %s64 = sphi 0, %s48
      %s72 = sphi 0, %s74
      %s75 = sphi 0, %s72
      %s76 = sphi 0, %s75
      %s92 = sphi 0, %s76
      %s98 = sphi 0, %s100
      %s101 = sphi 0, %s98
      %s102 = sphi 0, %s101
      %s118 = sphi 0, %s102
      %s124 = sphi 0, %s126
      %s127 = sphi 0, %s124
      %s128 = sphi 0, %s127
      %s144 = sphi 0, %s128
      %s152 = sphi 0, %s154
      %s155 = sphi 0, %s152
      %s156 = sphi 0, %s155
      %s172 = sphi 0, %s156
    $region4: #{tpu_custom_call.1} parent=1 // loop_header_branch
      %16 = sbr.rel (%p14) target = $region8
    $region5: #{tpu_custom_call.1} parent=1 // loop_body
      %s18 = ssub.s32 %s13, 1
      %s19 = ssub.s32 %s13, 2
      %s29 = sadd.s32 1, %s22
      %p30 = scmp.ge.s32.totalorder %s29, 1
      %s31 = scalar_select %p30, 0, %s29
      %s32 = sadd.s32 1, %s21
      %s33 = scalar_select %p30, %s32, %s21
      %p34 = scmp.ge.s32.totalorder %s33, 1
      %s35 = scalar_select %p34, 0, %s33
      %s36 = sadd.s32 1, %s20
      %s37 = scalar_select %p34, %s36, %s20
      %p38 = scmp.ge.s32.totalorder %s37, 2
      %s39 = scalar_select %p38, 0, %s37
      %s40 = ssub.s32 %s20, %s39
      %s41 = ssub.s32 %s22, %s31
      %s42 = sor.u32 %s40, %s41
      %p43 = scmp.eq.s32.totalorder %s42, 0
      %s45 = sadd.s32 %s44, 1
      %s46 = scalar_select %p43, %s44, %s45
      %p49 = pneg %p43
      %p50 = scmp.eq.s32.totalorder %s13, 1
      %p51 = por %p49, %p50
      %p52 = scmp.ne.s32.totalorder %s44, %s47
      %p53 = scmp.eq.s32.totalorder %s13, 0
      %p54 = por %p52, %p53
      %p55 = scmp.ne.s32.totalorder %s44, %s47
      %p56 = scmp.eq.s32.totalorder %s18, 1
      %p57 = por %p55, %p56
      %p58 = scmp.ne.s32.totalorder %s47, %s48
      %p59 = scmp.eq.s32.totalorder %s18, 0
      %p60 = por %p58, %p59
      %p61 = scmp.ne.s32.totalorder %s47, %s48
      %p62 = scmp.eq.s32.totalorder %s19, 1
      %p63 = por %p61, %p62
      %p65 = scmp.ne.s32.totalorder %s48, %s64
      %p66 = scmp.eq.s32.totalorder %s19, 0
      %p67 = por %p65, %p66
      %s68 = ssub.s32 %s22, %s31
      %s69 = ssub.s32 %s21, %s35
      %s70 = sor.u32 %s68, %s69
      %p71 = scmp.eq.s32.totalorder %s70, 0
      %s73 = sadd.s32 %s72, 1
      %s74 = scalar_select %p71, %s72, %s73
      %p77 = pneg %p71
      %p78 = scmp.eq.s32.totalorder %s13, 1
      %p79 = por %p77, %p78
      %p80 = scmp.ne.s32.totalorder %s72, %s75
      %p81 = scmp.eq.s32.totalorder %s13, 0
      %p82 = por %p80, %p81
      %p83 = scmp.ne.s32.totalorder %s72, %s75
      %p84 = scmp.eq.s32.totalorder %s18, 1
      %p85 = por %p83, %p84
      %p86 = scmp.ne.s32.totalorder %s75, %s76
      %p87 = scmp.eq.s32.totalorder %s18, 0
      %p88 = por %p86, %p87
      %p89 = scmp.ne.s32.totalorder %s75, %s76
      %p90 = scmp.eq.s32.totalorder %s19, 1
      %p91 = por %p89, %p90
      %p93 = scmp.ne.s32.totalorder %s76, %s92
      %p94 = scmp.eq.s32.totalorder %s19, 0
      %p95 = por %p93, %p94
      %s96 = ssub.s32 %s21, %s35
      %p97 = scmp.eq.s32.totalorder %s96, 0
      %s99 = sadd.s32 %s98, 1
      %s100 = scalar_select %p97, %s98, %s99
      %p103 = pneg %p97
      %p104 = scmp.eq.s32.totalorder %s13, 1
      %p105 = por %p103, %p104
      %p106 = scmp.ne.s32.totalorder %s98, %s101
      %p107 = scmp.eq.s32.totalorder %s13, 0
      %p108 = por %p106, %p107
      %p109 = scmp.ne.s32.totalorder %s98, %s101
      %p110 = scmp.eq.s32.totalorder %s18, 1
      %p111 = por %p109, %p110
      %p112 = scmp.ne.s32.totalorder %s101, %s102
      %p113 = scmp.eq.s32.totalorder %s18, 0
      %p114 = por %p112, %p113
      %p115 = scmp.ne.s32.totalorder %s101, %s102
      %p116 = scmp.eq.s32.totalorder %s19, 1
      %p117 = por %p115, %p116
      %p119 = scmp.ne.s32.totalorder %s102, %s118
      %p120 = scmp.eq.s32.totalorder %s19, 0
      %p121 = por %p119, %p120
      %s122 = ssub.s32 %s21, %s35
      %p123 = scmp.eq.s32.totalorder %s122, 0
      %s125 = sadd.s32 %s124, 1
      %s126 = scalar_select %p123, %s124, %s125
      %p129 = pneg %p123
      %p130 = scmp.eq.s32.totalorder %s13, 1
      %p131 = por %p129, %p130
      %p132 = scmp.ne.s32.totalorder %s124, %s127
      %p133 = scmp.eq.s32.totalorder %s13, 0
      %p134 = por %p132, %p133
      %p135 = scmp.ne.s32.totalorder %s124, %s127
      %p136 = scmp.eq.s32.totalorder %s18, 1
      %p137 = por %p135, %p136
      %p138 = scmp.ne.s32.totalorder %s127, %s128
      %p139 = scmp.eq.s32.totalorder %s18, 0
      %p140 = por %p138, %p139
      %p141 = scmp.ne.s32.totalorder %s127, %s128
      %p142 = scmp.eq.s32.totalorder %s19, 1
      %p143 = por %p141, %p142
      %p145 = scmp.ne.s32.totalorder %s128, %s144
      %p146 = scmp.eq.s32.totalorder %s19, 0
      %p147 = por %p145, %p146
      %s148 = ssub.s32 %s20, %s39
      %s149 = ssub.s32 %s21, %s35
      %s150 = sor.u32 %s148, %s149
      %p151 = scmp.eq.s32.totalorder %s150, 0
      %s153 = sadd.s32 %s152, 1
      %s154 = scalar_select %p151, %s152, %s153
      %p157 = pneg %p151
      %p158 = scmp.eq.s32.totalorder %s13, 1
      %p159 = por %p157, %p158
      %p160 = scmp.ne.s32.totalorder %s152, %s155
      %p161 = scmp.eq.s32.totalorder %s13, 0
      %p162 = por %p160, %p161
      %p163 = scmp.ne.s32.totalorder %s152, %s155
      %p164 = scmp.eq.s32.totalorder %s18, 1
      %p165 = por %p163, %p164
      %p166 = scmp.ne.s32.totalorder %s155, %s156
      %p167 = scmp.eq.s32.totalorder %s18, 0
      %p168 = por %p166, %p167
      %p169 = scmp.ne.s32.totalorder %s155, %s156
      %p170 = scmp.eq.s32.totalorder %s19, 1
      %p171 = por %p169, %p170
      %p173 = scmp.ne.s32.totalorder %s156, %s172
      %p174 = scmp.eq.s32.totalorder %s19, 0
      %p175 = por %p173, %p174
      %p176 = scmp.le.s32.totalorder 1, %s13
      %p177 = scmp.lt.s32.totalorder %s13, 3
      %p178 = pnand %p176, %p177
      %p179 = pneg %p178
      // Predicated region
      $region9: #{tpu_custom_call.1} parent=5 // pred_check
        _
      $region10: #{tpu_custom_call.1} parent=5 // pred_check_branch
        %181 = sbr.rel (%p178) target = $region12
      $region11: #{tpu_custom_call.1} parent=5 // pred_region
        %s182 = ssub.s32 %s13, 1
        // Predicated region
        $region13: #{tpu_custom_call.1} parent=11 // pred_check
          %p183 = pneg %p88
        $region14: #{tpu_custom_call.1} parent=11 // pred_check_branch
          %185 = sbr.rel (%p183) target = $region16
        $region15: #{tpu_custom_call.1} parent=11 // pred_region
          %s186 = smul.u32 4, %s25
          %p187 = scmp.lt.s32.totalorder %s186, 3
          %s188 = scalar_select %p187, %s186, 3
          %p189 = scmp.lt.s32.totalorder %s24, 0
          %s190 = scalar_select %p189, %s24, 0
          %s191 = sadd.s32 %s190, %s188
          %s192 = smul.addr %s191, 4
          %s193 = scalar_lea.vmem %s1, %s192
          %s194 = smul.u32 4, %s25
        $region16: #{tpu_custom_call.1} parent=11 // pred_fallthru
          _
        // Predicated region
        $region17: #{tpu_custom_call.1} parent=11 // pred_check
          %p195 = pneg %p114
        $region18: #{tpu_custom_call.1} parent=11 // pred_check_branch
          %197 = sbr.rel (%p195) target = $region20
        $region19: #{tpu_custom_call.1} parent=11 // pred_region
          %p198 = scmp.lt.s32.totalorder %s24, 0
          %s199 = scalar_select %p198, %s24, 0
          %s200 = scalar_lea.vmem %s2, %s199
        $region20: #{tpu_custom_call.1} parent=11 // pred_fallthru
          _
        // Predicated region
        $region21: #{tpu_custom_call.1} parent=11 // pred_check
          %p201 = pneg %p140
        $region22: #{tpu_custom_call.1} parent=11 // pred_check_branch
          %203 = sbr.rel (%p201) target = $region24
        $region23: #{tpu_custom_call.1} parent=11 // pred_region
          %p204 = scmp.lt.s32.totalorder %s24, 0
          %s205 = scalar_select %p204, %s24, 0
          %s206 = scalar_lea.vmem %s3, %s205
        $region24: #{tpu_custom_call.1} parent=11 // pred_fallthru
          _
      $region12: #{tpu_custom_call.1} parent=5 // pred_fallthru
        _
      %p207 = scmp.lt.s32.totalorder %s13, 2
      // Predicated region
      $region25: #{tpu_custom_call.1} parent=5 // pred_check
        %p208 = pneg %p207
      $region26: #{tpu_custom_call.1} parent=5 // pred_check_branch
        %210 = sbr.rel (%p208) target = $region28
      $region27: #{tpu_custom_call.1} parent=5 // pred_region
        // Predicated region
        $region29: #{tpu_custom_call.1} parent=27 // pred_check
          %p211 = pneg %p54
        $region30: #{tpu_custom_call.1} parent=27 // pred_check_branch
          %213 = sbr.rel (%p211) target = $region32
        $region31: #{tpu_custom_call.1} parent=27 // pred_region
          %s214 = smul.u32 32, %s20
          %p215 = scmp.lt.s32.totalorder %s214, 63
          %s216 = scalar_select %p215, %s214, 63
          %p217 = scmp.lt.s32.totalorder %s22, 0
          %s218 = scalar_select %p217, %s22, 0
          %s219 = sadd.s32 %s218, %s216
          %s220 = smul.addr %s219, 4
          %s221 = scalar_lea.vmem %s0, %s220
          %s222 = smul.u32 32, %s20
        $region32: #{tpu_custom_call.1} parent=27 // pred_fallthru
          _
      $region28: #{tpu_custom_call.1} parent=5 // pred_fallthru
        _
      %p223 = scmp.le.s32.totalorder 1, %s13
      %p224 = scmp.lt.s32.totalorder %s13, 3
      %p225 = pnand %p223, %p224
      %p226 = pneg %p225
      // Predicated region
      $region33: #{tpu_custom_call.1} parent=5 // pred_check
        _
      $region34: #{tpu_custom_call.1} parent=5 // pred_check_branch
        %228 = sbr.rel (%p225) target = $region36
      $region35: #{tpu_custom_call.1} parent=5 // pred_region
        %s229 = ssub.s32 %s13, 1
        %s230 = smul.u32 32, %s23
        %p231 = scmp.lt.s32.totalorder %s230, 63
        %s232 = scalar_select %p231, %s230, 63
        %p233 = scmp.lt.s32.totalorder %s25, 0
        %s234 = scalar_select %p233, %s25, 0
        %s235 = sadd.s32 %s234, %s232
        %s236 = smul.addr %s235, 4
        %s237 = scalar_lea.vmem %s0, %s236
        %p238 = pneg %p60
        %p239 = pneg %p57
        %s240 = smul.u32 4, %s25
        %p241 = scmp.lt.s32.totalorder %s240, 3
        %s242 = scalar_select %p241, %s240, 3
        %p243 = scmp.lt.s32.totalorder %s24, 0
        %s244 = scalar_select %p243, %s24, 0
        %s245 = sadd.s32 %s244, %s242
        %s246 = smul.addr %s245, 4
        %s247 = scalar_lea.vmem %s1, %s246
        %p248 = pneg %p88
        %p249 = pneg %p85
        %p250 = scmp.lt.s32.totalorder %s24, 0
        %s251 = scalar_select %p250, %s24, 0
        %s252 = scalar_lea.vmem %s2, %s251
        %p253 = pneg %p114
        %p254 = pneg %p111
        %p255 = scmp.lt.s32.totalorder %s24, 0
        %s256 = scalar_select %p255, %s24, 0
        %s257 = scalar_lea.vmem %s3, %s256
        %p258 = pneg %p140
        %p259 = pneg %p137
        %p260 = pneg %p168
        %p261 = pneg %p165
        %s262 = sand.u32 %s155, 1
        %s263 = scalar_lea.sflag [#allocation4], %s262
        %s264 = sand.u32 %s155, 1
        %s265 = smul.addr %s264, 128
        %s266 = scalar_lea.vmem [#allocation3], %s265
        %s267 = smul.u32 32, %s23
        %p268 = scmp.lt.s32.totalorder %s267, 63
        %s269 = scalar_select %p268, %s267, 63
        %p270 = scmp.lt.s32.totalorder %s25, 0
        %s271 = scalar_select %p270, %s25, 0
        %s272 = sadd.s32 %s271, %s269
        %s273 = smul.addr %s272, 4
        %s274 = scalar_lea.vmem %s0, %s273
        %s275 = smul.u32 32, %s23
        %s276 = smul.u32 4, %s25
        %p277 = scmp.lt.s32.totalorder %s276, 3
        %s278 = scalar_select %p277, %s276, 3
        %p279 = scmp.lt.s32.totalorder %s24, 0
        %s280 = scalar_select %p279, %s24, 0
        %s281 = sadd.s32 %s280, %s278
        %s282 = smul.addr %s281, 4
        %s283 = scalar_lea.vmem %s1, %s282
        %s284 = smul.u32 4, %s25
        %p285 = scmp.lt.s32.totalorder %s24, 0
        %s286 = scalar_select %p285, %s24, 0
        %s287 = scalar_lea.vmem %s2, %s286
        %p288 = scmp.lt.s32.totalorder %s24, 0
        %s289 = scalar_select %p288, %s24, 0
        %s290 = scalar_lea.vmem %s3, %s289
        %s291 = smul.u32 32, %s23
        %p293 = scmp.eq.s32.totalorder %s25, 0
        // Predicated region
        $region37: #{tpu_custom_call.1} parent=35 // pred_check
          %p294 = pneg %p293
        $region38: #{tpu_custom_call.1} parent=35 // pred_check_branch
          %296 = sbr.rel (%p294) target = $region40
        $region39: #{tpu_custom_call.1} parent=35 // pred_region
          %297 = vst [vmem:[#allocation2] sm:$0xff] 0.0
          %298 = vst [vmem:[#allocation2 + $0x8] sm:$0xff] 0.0
          %299 = vst [vmem:[#allocation2 + $0x10] sm:$0xff] 0.0
          %300 = vst [vmem:[#allocation2 + $0x18] sm:$0xff] 0.0
          %301 = vst [vmem:[#allocation2 + $0x20] sm:$0xff] 0.0
          %302 = vst [vmem:[#allocation2 + $0x28] sm:$0xff] 0.0
          %303 = vst [vmem:[#allocation2 + $0x30] sm:$0xff] 0.0
          %304 = vst [vmem:[#allocation2 + $0x38] sm:$0xff] 0.0
          %305 = vst [vmem:[#allocation2 + $0x40] sm:$0xff] 0.0
          %306 = vst [vmem:[#allocation2 + $0x48] sm:$0xff] 0.0
          %307 = vst [vmem:[#allocation2 + $0x50] sm:$0xff] 0.0
          %308 = vst [vmem:[#allocation2 + $0x58] sm:$0xff] 0.0
          %309 = vst [vmem:[#allocation2 + $0x60] sm:$0xff] 0.0
          %310 = vst [vmem:[#allocation2 + $0x68] sm:$0xff] 0.0
          %311 = vst [vmem:[#allocation2 + $0x70] sm:$0xff] 0.0
          %312 = vst [vmem:[#allocation2 + $0x78] sm:$0xff] 0.0
          %313 = vst [vmem:[#allocation2 + $0x80] sm:$0xff] 0.0
          %314 = vst [vmem:[#allocation2 + $0x88] sm:$0xff] 0.0
          %315 = vst [vmem:[#allocation2 + $0x90] sm:$0xff] 0.0
          %316 = vst [vmem:[#allocation2 + $0x98] sm:$0xff] 0.0
          %317 = vst [vmem:[#allocation2 + $0xa0] sm:$0xff] 0.0
          %318 = vst [vmem:[#allocation2 + $0xa8] sm:$0xff] 0.0
          %319 = vst [vmem:[#allocation2 + $0xb0] sm:$0xff] 0.0
          %320 = vst [vmem:[#allocation2 + $0xb8] sm:$0xff] 0.0
          %321 = vst [vmem:[#allocation2 + $0xc0] sm:$0xff] 0.0
          %322 = vst [vmem:[#allocation2 + $0xc8] sm:$0xff] 0.0
          %323 = vst [vmem:[#allocation2 + $0xd0] sm:$0xff] 0.0
          %324 = vst [vmem:[#allocation2 + $0xd8] sm:$0xff] 0.0
          %325 = vst [vmem:[#allocation2 + $0xe0] sm:$0xff] 0.0
          %326 = vst [vmem:[#allocation2 + $0xe8] sm:$0xff] 0.0
          %327 = vst [vmem:[#allocation2 + $0xf0] sm:$0xff] 0.0
          %328 = vst [vmem:[#allocation2 + $0xf8] sm:$0xff] 0.0
        $region40: #{tpu_custom_call.1} parent=35 // pred_fallthru
          _
        %v329 = vld [vmem:[#allocation2] sm:$0xff]
        %v330 = vld [vmem:[#allocation2 + $0x8] sm:$0xff]
        %v331 = vld [vmem:[#allocation2 + $0x10] sm:$0xff]
        %v332 = vld [vmem:[#allocation2 + $0x18] sm:$0xff]
        %v333 = vld [vmem:[#allocation2 + $0x20] sm:$0xff]
        %v334 = vld [vmem:[#allocation2 + $0x28] sm:$0xff]
        %v335 = vld [vmem:[#allocation2 + $0x30] sm:$0xff]
        %v336 = vld [vmem:[#allocation2 + $0x38] sm:$0xff]
        %v337 = vld [vmem:[#allocation2 + $0x40] sm:$0xff]
        %v338 = vld [vmem:[#allocation2 + $0x48] sm:$0xff]
        %v339 = vld [vmem:[#allocation2 + $0x50] sm:$0xff]
        %v340 = vld [vmem:[#allocation2 + $0x58] sm:$0xff]
        %v341 = vld [vmem:[#allocation2 + $0x60] sm:$0xff]
        %v342 = vld [vmem:[#allocation2 + $0x68] sm:$0xff]
        %v343 = vld [vmem:[#allocation2 + $0x70] sm:$0xff]
        %v344 = vld [vmem:[#allocation2 + $0x78] sm:$0xff]
        %v345 = vld [vmem:[#allocation2 + $0x80] sm:$0xff]
        %v346 = vld [vmem:[#allocation2 + $0x88] sm:$0xff]
        %v347 = vld [vmem:[#allocation2 + $0x90] sm:$0xff]
        %v348 = vld [vmem:[#allocation2 + $0x98] sm:$0xff]
        %v349 = vld [vmem:[#allocation2 + $0xa0] sm:$0xff]
        %v350 = vld [vmem:[#allocation2 + $0xa8] sm:$0xff]
        %v351 = vld [vmem:[#allocation2 + $0xb0] sm:$0xff]
        %v352 = vld [vmem:[#allocation2 + $0xb8] sm:$0xff]
        %v353 = vld [vmem:[#allocation2 + $0xc0] sm:$0xff]
        %v354 = vld [vmem:[#allocation2 + $0xc8] sm:$0xff]
        %v355 = vld [vmem:[#allocation2 + $0xd0] sm:$0xff]
        %v356 = vld [vmem:[#allocation2 + $0xd8] sm:$0xff]
        %v357 = vld [vmem:[#allocation2 + $0xe0] sm:$0xff]
        %v358 = vld [vmem:[#allocation2 + $0xe8] sm:$0xff]
        %v359 = vld [vmem:[#allocation2 + $0xf0] sm:$0xff]
        %v360 = vld [vmem:[#allocation2 + $0xf8] sm:$0xff]
        %v361 = vld [vmem:[%s274] sm:$0xf]
        %v362 = vld [vmem:[%s274 + $0x4] sm:$0xf]
        %v363 = vld [vmem:[%s274 + $0x8] sm:$0xf]
        %v364 = vld [vmem:[%s274 + $0xc] sm:$0xf]
        %v365 = vld [vmem:[%s274 + $0x10] sm:$0xf]
        %v366 = vld [vmem:[%s274 + $0x14] sm:$0xf]
        %v367 = vld [vmem:[%s274 + $0x18] sm:$0xf]
        %v368 = vld [vmem:[%s274 + $0x1c] sm:$0xf]
        %v369 = vld [vmem:[%s274 + $0x20] sm:$0xf]
        %v370 = vld [vmem:[%s274 + $0x24] sm:$0xf]
        %v371 = vld [vmem:[%s274 + $0x28] sm:$0xf]
        %v372 = vld [vmem:[%s274 + $0x2c] sm:$0xf]
        %v373 = vld [vmem:[%s274 + $0x30] sm:$0xf]
        %v374 = vld [vmem:[%s274 + $0x34] sm:$0xf]
        %v375 = vld [vmem:[%s274 + $0x38] sm:$0xf]
        %v376 = vld [vmem:[%s274 + $0x3c] sm:$0xf]
        %v377 = vld [vmem:[%s274 + $0x40] sm:$0xf]
        %v378 = vld [vmem:[%s274 + $0x44] sm:$0xf]
        %v379 = vld [vmem:[%s274 + $0x48] sm:$0xf]
        %v380 = vld [vmem:[%s274 + $0x4c] sm:$0xf]
        %v381 = vld [vmem:[%s274 + $0x50] sm:$0xf]
        %v382 = vld [vmem:[%s274 + $0x54] sm:$0xf]
        %v383 = vld [vmem:[%s274 + $0x58] sm:$0xf]
        %v384 = vld [vmem:[%s274 + $0x5c] sm:$0xf]
        %v385 = vld [vmem:[%s274 + $0x60] sm:$0xf]
        %v386 = vld [vmem:[%s274 + $0x64] sm:$0xf]
        %v387 = vld [vmem:[%s274 + $0x68] sm:$0xf]
        %v388 = vld [vmem:[%s274 + $0x6c] sm:$0xf]
        %v389 = vld [vmem:[%s274 + $0x70] sm:$0xf]
        %v390 = vld [vmem:[%s274 + $0x74] sm:$0xf]
        %v391 = vld [vmem:[%s274 + $0x78] sm:$0xf]
        %v392 = vld [vmem:[%s274 + $0x7c] sm:$0xf]
        %v393 = vld [vmem:[%s283] sm:$0xf]
        %v394 = vld [vmem:[%s283 + $0x4] sm:$0xf]
        %v395 = vld [vmem:[%s283 + $0x8] sm:$0xf]
        %v396 = vld [vmem:[%s283 + $0xc] sm:$0xf]
        %v429 = vunpack.c.l.b16 %v361
        %v430 = vunpack.c.l.b16 %v362
        %v431 = vunpack.c.l.b16 %v363
        %v432 = vunpack.c.l.b16 %v364
        %v433 = vunpack.c.l.b16 %v365
        %v434 = vunpack.c.l.b16 %v366
        %v435 = vunpack.c.l.b16 %v367
        %v436 = vunpack.c.l.b16 %v368
        %v437 = vunpack.c.l.b16 %v369
        %v438 = vunpack.c.l.b16 %v370
        %v439 = vunpack.c.l.b16 %v371
        %v440 = vunpack.c.l.b16 %v372
        %v441 = vunpack.c.l.b16 %v373
        %v442 = vunpack.c.l.b16 %v374
        %v443 = vunpack.c.l.b16 %v375
        %v444 = vunpack.c.l.b16 %v376
        %v445 = vunpack.c.l.b16 %v377
        %v446 = vunpack.c.l.b16 %v378
        %v447 = vunpack.c.l.b16 %v379
        %v448 = vunpack.c.l.b16 %v380
        %v449 = vunpack.c.l.b16 %v381
        %v450 = vunpack.c.l.b16 %v382
        %v451 = vunpack.c.l.b16 %v383
        %v452 = vunpack.c.l.b16 %v384
        %v453 = vunpack.c.l.b16 %v385
        %v454 = vunpack.c.l.b16 %v386
        %v455 = vunpack.c.l.b16 %v387
        %v456 = vunpack.c.l.b16 %v388
        %v457 = vunpack.c.l.b16 %v389
        %v458 = vunpack.c.l.b16 %v390
        %v459 = vunpack.c.l.b16 %v391
        %v460 = vunpack.c.l.b16 %v392
        %v461 = vpack.c.b16 %v430, %v429
        %v462 = vpack.c.b16 %v432, %v431
        %v463 = vpack.c.b16 %v434, %v433
        %v464 = vpack.c.b16 %v436, %v435
        %v465 = vpack.c.b16 %v438, %v437
        %v466 = vpack.c.b16 %v440, %v439
        %v467 = vpack.c.b16 %v442, %v441
        %v468 = vpack.c.b16 %v444, %v443
        %v469 = vpack.c.b16 %v446, %v445
        %v470 = vpack.c.b16 %v448, %v447
        %v471 = vpack.c.b16 %v450, %v449
        %v472 = vpack.c.b16 %v452, %v451
        %v473 = vpack.c.b16 %v454, %v453
        %v474 = vpack.c.b16 %v456, %v455
        %v475 = vpack.c.b16 %v458, %v457
        %v476 = vpack.c.b16 %v460, %v459
        %v481 = vunpack.c.l.b16 %v393
        %v482 = vunpack.c.l.b16 %v394
        %v483 = vunpack.c.l.b16 %v395
        %v484 = vunpack.c.l.b16 %v396
        %v485 = vpack.c.b16 %v482, %v481
        %v486 = vpack.c.b16 %v484, %v483
        %vm489 = vcmask 261120
        %v491 = vsel %vm489, %v461, 0
        %v494 = vsel %vm489, %v462, 0
        %v497 = vsel %vm489, %v463, 0
        %v500 = vsel %vm489, %v464, 0
        %v503 = vsel %vm489, %v465, 0
        %v506 = vsel %vm489, %v466, 0
        %v509 = vsel %vm489, %v467, 0
        %v512 = vsel %vm489, %v468, 0
        %v515 = vsel %vm489, %v469, 0
        %v518 = vsel %vm489, %v470, 0
        %v521 = vsel %vm489, %v471, 0
        %v524 = vsel %vm489, %v472, 0
        %v527 = vsel %vm489, %v473, 0
        %v530 = vsel %vm489, %v474, 0
        %v533 = vsel %vm489, %v475, 0
        %v536 = vsel %vm489, %v476, 0
        %538 = vmatpush.bf16.msra.mxu0 0
        %539 = vmatpush.bf16.msra.mxu0 0
        %540 = vmatpush.bf16.msra.mxu0 0
        %541 = vmatpush.bf16.msra.mxu0 0
        %542 = vmatpush.bf16.msra.mxu0 0
        %543 = vmatpush.bf16.msra.mxu0 0
        %544 = vmatpush.bf16.msra.mxu0 %v486
        %545 = vmatpush.bf16.msra.mxu0 %v485
        %546 = vmatmul.bf16.gmra.mxu0 %v491
        %v547 = vpop.f32.mrf.mxu0
        %v548 = vadd.f32 0.0, %v547
        %v549 = vpop.f32.mrf.mxu0
        %v550 = vadd.f32 0.0, %v549
        %551 = vmatmul.bf16.gmra.mxu0 %v494
        %v552 = vpop.f32.mrf.mxu0
        %v553 = vadd.f32 0.0, %v552
        %v554 = vpop.f32.mrf.mxu0
        %v555 = vadd.f32 0.0, %v554
        %556 = vmatmul.bf16.gmra.mxu0 %v497
        %v557 = vpop.f32.mrf.mxu0
        %v558 = vadd.f32 0.0, %v557
        %v559 = vpop.f32.mrf.mxu0
        %v560 = vadd.f32 0.0, %v559
        %561 = vmatmul.bf16.gmra.mxu0 %v500
        %v562 = vpop.f32.mrf.mxu0
        %v563 = vadd.f32 0.0, %v562
        %v564 = vpop.f32.mrf.mxu0
        %v565 = vadd.f32 0.0, %v564
        %566 = vmatmul.bf16.gmra.mxu0 %v503
        %v567 = vpop.f32.mrf.mxu0
        %v568 = vadd.f32 0.0, %v567
        %v569 = vpop.f32.mrf.mxu0
        %v570 = vadd.f32 0.0, %v569
        %571 = vmatmul.bf16.gmra.mxu0 %v506
        %v572 = vpop.f32.mrf.mxu0
        %v573 = vadd.f32 0.0, %v572
        %v574 = vpop.f32.mrf.mxu0
        %v575 = vadd.f32 0.0, %v574
        %576 = vmatmul.bf16.gmra.mxu0 %v509
        %v577 = vpop.f32.mrf.mxu0
        %v578 = vadd.f32 0.0, %v577
        %v579 = vpop.f32.mrf.mxu0
        %v580 = vadd.f32 0.0, %v579
        %581 = vmatmul.bf16.gmra.mxu0 %v512
        %v582 = vpop.f32.mrf.mxu0
        %v583 = vadd.f32 0.0, %v582
        %v584 = vpop.f32.mrf.mxu0
        %v585 = vadd.f32 0.0, %v584
        %586 = vmatmul.bf16.gmra.mxu0 %v515
        %v587 = vpop.f32.mrf.mxu0
        %v588 = vadd.f32 0.0, %v587
        %v589 = vpop.f32.mrf.mxu0
        %v590 = vadd.f32 0.0, %v589
        %591 = vmatmul.bf16.gmra.mxu0 %v518
        %v592 = vpop.f32.mrf.mxu0
        %v593 = vadd.f32 0.0, %v592
        %v594 = vpop.f32.mrf.mxu0
        %v595 = vadd.f32 0.0, %v594
        %596 = vmatmul.bf16.gmra.mxu0 %v521
        %v597 = vpop.f32.mrf.mxu0
        %v598 = vadd.f32 0.0, %v597
        %v599 = vpop.f32.mrf.mxu0
        %v600 = vadd.f32 0.0, %v599
        %601 = vmatmul.bf16.gmra.mxu0 %v524
        %v602 = vpop.f32.mrf.mxu0
        %v603 = vadd.f32 0.0, %v602
        %v604 = vpop.f32.mrf.mxu0
        %v605 = vadd.f32 0.0, %v604
        %606 = vmatmul.bf16.gmra.mxu0 %v527
        %v607 = vpop.f32.mrf.mxu0
        %v608 = vadd.f32 0.0, %v607
        %v609 = vpop.f32.mrf.mxu0
        %v610 = vadd.f32 0.0, %v609
        %611 = vmatmul.bf16.gmra.mxu0 %v530
        %v612 = vpop.f32.mrf.mxu0
        %v613 = vadd.f32 0.0, %v612
        %v614 = vpop.f32.mrf.mxu0
        %v615 = vadd.f32 0.0, %v614
        %616 = vmatmul.bf16.gmra.mxu0 %v533
        %v617 = vpop.f32.mrf.mxu0
        %v618 = vadd.f32 0.0, %v617
        %v619 = vpop.f32.mrf.mxu0
        %v620 = vadd.f32 0.0, %v619
        %621 = vmatmul.bf16.gmra.mxu0 %v536
        %v622 = vpop.f32.mrf.mxu0
        %v623 = vadd.f32 0.0, %v622
        %v624 = vpop.f32.mrf.mxu0
        %v625 = vadd.f32 0.0, %v624
        %626 = vdwg.mxu0
        %v627 = vadd.f32 %v329, %v548
        %v628 = vadd.f32 %v330, %v550
        %v629 = vadd.f32 %v331, %v553
        %v630 = vadd.f32 %v332, %v555
        %v631 = vadd.f32 %v333, %v558
        %v632 = vadd.f32 %v334, %v560
        %v633 = vadd.f32 %v335, %v563
        %v634 = vadd.f32 %v336, %v565
        %v635 = vadd.f32 %v337, %v568
        %v636 = vadd.f32 %v338, %v570
        %v637 = vadd.f32 %v339, %v573
        %v638 = vadd.f32 %v340, %v575
        %v639 = vadd.f32 %v341, %v578
        %v640 = vadd.f32 %v342, %v580
        %v641 = vadd.f32 %v343, %v583
        %v642 = vadd.f32 %v344, %v585
        %v643 = vadd.f32 %v345, %v588
        %v644 = vadd.f32 %v346, %v590
        %v645 = vadd.f32 %v347, %v593
        %v646 = vadd.f32 %v348, %v595
        %v647 = vadd.f32 %v349, %v598
        %v648 = vadd.f32 %v350, %v600
        %v649 = vadd.f32 %v351, %v603
        %v650 = vadd.f32 %v352, %v605
        %v651 = vadd.f32 %v353, %v608
        %v652 = vadd.f32 %v354, %v610
        %v653 = vadd.f32 %v355, %v613
        %v654 = vadd.f32 %v356, %v615
        %v655 = vadd.f32 %v357, %v618
        %v656 = vadd.f32 %v358, %v620
        %v657 = vadd.f32 %v359, %v623
        %v658 = vadd.f32 %v360, %v625
        %659 = vst [vmem:[#allocation2] sm:$0xff] %v627
        %660 = vst [vmem:[#allocation2 + $0x8] sm:$0xff] %v628
        %661 = vst [vmem:[#allocation2 + $0x10] sm:$0xff] %v629
        %662 = vst [vmem:[#allocation2 + $0x18] sm:$0xff] %v630
        %663 = vst [vmem:[#allocation2 + $0x20] sm:$0xff] %v631
        %664 = vst [vmem:[#allocation2 + $0x28] sm:$0xff] %v632
        %665 = vst [vmem:[#allocation2 + $0x30] sm:$0xff] %v633
        %666 = vst [vmem:[#allocation2 + $0x38] sm:$0xff] %v634
        %667 = vst [vmem:[#allocation2 + $0x40] sm:$0xff] %v635
        %668 = vst [vmem:[#allocation2 + $0x48] sm:$0xff] %v636
        %669 = vst [vmem:[#allocation2 + $0x50] sm:$0xff] %v637
        %670 = vst [vmem:[#allocation2 + $0x58] sm:$0xff] %v638
        %671 = vst [vmem:[#allocation2 + $0x60] sm:$0xff] %v639
        %672 = vst [vmem:[#allocation2 + $0x68] sm:$0xff] %v640
        %673 = vst [vmem:[#allocation2 + $0x70] sm:$0xff] %v641
        %674 = vst [vmem:[#allocation2 + $0x78] sm:$0xff] %v642
        %675 = vst [vmem:[#allocation2 + $0x80] sm:$0xff] %v643
        %676 = vst [vmem:[#allocation2 + $0x88] sm:$0xff] %v644
        %677 = vst [vmem:[#allocation2 + $0x90] sm:$0xff] %v645
        %678 = vst [vmem:[#allocation2 + $0x98] sm:$0xff] %v646
        %679 = vst [vmem:[#allocation2 + $0xa0] sm:$0xff] %v647
        %680 = vst [vmem:[#allocation2 + $0xa8] sm:$0xff] %v648
        %681 = vst [vmem:[#allocation2 + $0xb0] sm:$0xff] %v649
        %682 = vst [vmem:[#allocation2 + $0xb8] sm:$0xff] %v650
        %683 = vst [vmem:[#allocation2 + $0xc0] sm:$0xff] %v651
        %684 = vst [vmem:[#allocation2 + $0xc8] sm:$0xff] %v652
        %685 = vst [vmem:[#allocation2 + $0xd0] sm:$0xff] %v653
        %686 = vst [vmem:[#allocation2 + $0xd8] sm:$0xff] %v654
        %687 = vst [vmem:[#allocation2 + $0xe0] sm:$0xff] %v655
        %688 = vst [vmem:[#allocation2 + $0xe8] sm:$0xff] %v656
        %689 = vst [vmem:[#allocation2 + $0xf0] sm:$0xff] %v657
        %690 = vst [vmem:[#allocation2 + $0xf8] sm:$0xff] %v658
        // Predicated region
        $region41: #{tpu_custom_call.1} parent=35 // pred_check
          %p691 = pneg %p293
        $region42: #{tpu_custom_call.1} parent=35 // pred_check_branch
          %693 = sbr.rel (%p691) target = $region44
        $region43: #{tpu_custom_call.1} parent=35 // pred_region
          %v694 = vld [vmem:[#allocation2] sm:$0xff]
          %v695 = vld [vmem:[#allocation2 + $0x8] sm:$0xff]
          %v696 = vld [vmem:[#allocation2 + $0x10] sm:$0xff]
          %v697 = vld [vmem:[#allocation2 + $0x18] sm:$0xff]
          %v698 = vld [vmem:[#allocation2 + $0x20] sm:$0xff]
          %v699 = vld [vmem:[#allocation2 + $0x28] sm:$0xff]
          %v700 = vld [vmem:[#allocation2 + $0x30] sm:$0xff]
          %v701 = vld [vmem:[#allocation2 + $0x38] sm:$0xff]
          %v702 = vld [vmem:[#allocation2 + $0x40] sm:$0xff]
          %v703 = vld [vmem:[#allocation2 + $0x48] sm:$0xff]
          %v704 = vld [vmem:[#allocation2 + $0x50] sm:$0xff]
          %v705 = vld [vmem:[#allocation2 + $0x58] sm:$0xff]
          %v706 = vld [vmem:[#allocation2 + $0x60] sm:$0xff]
          %v707 = vld [vmem:[#allocation2 + $0x68] sm:$0xff]
          %v708 = vld [vmem:[#allocation2 + $0x70] sm:$0xff]
          %v709 = vld [vmem:[#allocation2 + $0x78] sm:$0xff]
          %v710 = vld [vmem:[#allocation2 + $0x80] sm:$0xff]
          %v711 = vld [vmem:[#allocation2 + $0x88] sm:$0xff]
          %v712 = vld [vmem:[#allocation2 + $0x90] sm:$0xff]
          %v713 = vld [vmem:[#allocation2 + $0x98] sm:$0xff]
          %v714 = vld [vmem:[#allocation2 + $0xa0] sm:$0xff]
          %v715 = vld [vmem:[#allocation2 + $0xa8] sm:$0xff]
          %v716 = vld [vmem:[#allocation2 + $0xb0] sm:$0xff]
          %v717 = vld [vmem:[#allocation2 + $0xb8] sm:$0xff]
          %v718 = vld [vmem:[#allocation2 + $0xc0] sm:$0xff]
          %v719 = vld [vmem:[#allocation2 + $0xc8] sm:$0xff]
          %v720 = vld [vmem:[#allocation2 + $0xd0] sm:$0xff]
          %v721 = vld [vmem:[#allocation2 + $0xd8] sm:$0xff]
          %v722 = vld [vmem:[#allocation2 + $0xe0] sm:$0xff]
          %v723 = vld [vmem:[#allocation2 + $0xe8] sm:$0xff]
          %v724 = vld [vmem:[#allocation2 + $0xf0] sm:$0xff]
          %v725 = vld [vmem:[#allocation2 + $0xf8] sm:$0xff]
          %v726 = vld [vmem:[%s287] sm:$0x1]
          %v728 = vperm.slane %v726, 0
          %v730 = vmul.f32 %v694, %v728
          %v731 = vmul.f32 %v695, %v728
          %v732 = vmul.f32 %v696, %v728
          %v733 = vmul.f32 %v697, %v728
          %v734 = vmul.f32 %v698, %v728
          %v735 = vmul.f32 %v699, %v728
          %v736 = vmul.f32 %v700, %v728
          %v737 = vmul.f32 %v701, %v728
          %v738 = vmul.f32 %v702, %v728
          %v739 = vmul.f32 %v703, %v728
          %v740 = vmul.f32 %v704, %v728
          %v741 = vmul.f32 %v705, %v728
          %v742 = vmul.f32 %v706, %v728
          %v743 = vmul.f32 %v707, %v728
          %v744 = vmul.f32 %v708, %v728
          %v745 = vmul.f32 %v709, %v728
          %v746 = vmul.f32 %v710, %v728
          %v747 = vmul.f32 %v711, %v728
          %v748 = vmul.f32 %v712, %v728
          %v749 = vmul.f32 %v713, %v728
          %v750 = vmul.f32 %v714, %v728
          %v751 = vmul.f32 %v715, %v728
          %v752 = vmul.f32 %v716, %v728
          %v753 = vmul.f32 %v717, %v728
          %v754 = vmul.f32 %v718, %v728
          %v755 = vmul.f32 %v719, %v728
          %v756 = vmul.f32 %v720, %v728
          %v757 = vmul.f32 %v721, %v728
          %v758 = vmul.f32 %v722, %v728
          %v759 = vmul.f32 %v723, %v728
          %v760 = vmul.f32 %v724, %v728
          %v761 = vmul.f32 %v725, %v728
          %v762 = vld [vmem:[%s290] sm:$0x1]
          %v764 = vperm.slane %v762, 0
          %v766 = vadd.f32 %v730, %v764
          %v767 = vadd.f32 %v731, %v764
          %v768 = vadd.f32 %v732, %v764
          %v769 = vadd.f32 %v733, %v764
          %v770 = vadd.f32 %v734, %v764
          %v771 = vadd.f32 %v735, %v764
          %v772 = vadd.f32 %v736, %v764
          %v773 = vadd.f32 %v737, %v764
          %v774 = vadd.f32 %v738, %v764
          %v775 = vadd.f32 %v739, %v764
          %v776 = vadd.f32 %v740, %v764
          %v777 = vadd.f32 %v741, %v764
          %v778 = vadd.f32 %v742, %v764
          %v779 = vadd.f32 %v743, %v764
          %v780 = vadd.f32 %v744, %v764
          %v781 = vadd.f32 %v745, %v764
          %v782 = vadd.f32 %v746, %v764
          %v783 = vadd.f32 %v747, %v764
          %v784 = vadd.f32 %v748, %v764
          %v785 = vadd.f32 %v749, %v764
          %v786 = vadd.f32 %v750, %v764
          %v787 = vadd.f32 %v751, %v764
          %v788 = vadd.f32 %v752, %v764
          %v789 = vadd.f32 %v753, %v764
          %v790 = vadd.f32 %v754, %v764
          %v791 = vadd.f32 %v755, %v764
          %v792 = vadd.f32 %v756, %v764
          %v793 = vadd.f32 %v757, %v764
          %v794 = vadd.f32 %v758, %v764
          %v795 = vadd.f32 %v759, %v764
          %v796 = vadd.f32 %v760, %v764
          %v797 = vadd.f32 %v761, %v764
          %v798 = vmax.f32 %v766, 0.0
          %v799 = vmax.f32 %v767, 0.0
          %v800 = vmax.f32 %v768, 0.0
          %v801 = vmax.f32 %v769, 0.0
          %v802 = vmax.f32 %v770, 0.0
          %v803 = vmax.f32 %v771, 0.0
          %v804 = vmax.f32 %v772, 0.0
          %v805 = vmax.f32 %v773, 0.0
          %v806 = vmax.f32 %v774, 0.0
          %v807 = vmax.f32 %v775, 0.0
          %v808 = vmax.f32 %v776, 0.0
          %v809 = vmax.f32 %v777, 0.0
          %v810 = vmax.f32 %v778, 0.0
          %v811 = vmax.f32 %v779, 0.0
          %v812 = vmax.f32 %v780, 0.0
          %v813 = vmax.f32 %v781, 0.0
          %v814 = vmax.f32 %v782, 0.0
          %v815 = vmax.f32 %v783, 0.0
          %v816 = vmax.f32 %v784, 0.0
          %v817 = vmax.f32 %v785, 0.0
          %v818 = vmax.f32 %v786, 0.0
          %v819 = vmax.f32 %v787, 0.0
          %v820 = vmax.f32 %v788, 0.0
          %v821 = vmax.f32 %v789, 0.0
          %v822 = vmax.f32 %v790, 0.0
          %v823 = vmax.f32 %v791, 0.0
          %v824 = vmax.f32 %v792, 0.0
          %v825 = vmax.f32 %v793, 0.0
          %v826 = vmax.f32 %v794, 0.0
          %v827 = vmax.f32 %v795, 0.0
          %v828 = vmax.f32 %v796, 0.0
          %v829 = vmax.f32 %v797, 0.0
          %v830 = vmin.f32 %v798, 6.0
          %v831 = vmin.f32 %v799, 6.0
          %v832 = vmin.f32 %v800, 6.0
          %v833 = vmin.f32 %v801, 6.0
          %v834 = vmin.f32 %v802, 6.0
          %v835 = vmin.f32 %v803, 6.0
          %v836 = vmin.f32 %v804, 6.0
          %v837 = vmin.f32 %v805, 6.0
          %v838 = vmin.f32 %v806, 6.0
          %v839 = vmin.f32 %v807, 6.0
          %v840 = vmin.f32 %v808, 6.0
          %v841 = vmin.f32 %v809, 6.0
          %v842 = vmin.f32 %v810, 6.0
          %v843 = vmin.f32 %v811, 6.0
          %v844 = vmin.f32 %v812, 6.0
          %v845 = vmin.f32 %v813, 6.0
          %v846 = vmin.f32 %v814, 6.0
          %v847 = vmin.f32 %v815, 6.0
          %v848 = vmin.f32 %v816, 6.0
          %v849 = vmin.f32 %v817, 6.0
          %v850 = vmin.f32 %v818, 6.0
          %v851 = vmin.f32 %v819, 6.0
          %v852 = vmin.f32 %v820, 6.0
          %v853 = vmin.f32 %v821, 6.0
          %v854 = vmin.f32 %v822, 6.0
          %v855 = vmin.f32 %v823, 6.0
          %v856 = vmin.f32 %v824, 6.0
          %v857 = vmin.f32 %v825, 6.0
          %v858 = vmin.f32 %v826, 6.0
          %v859 = vmin.f32 %v827, 6.0
          %v860 = vmin.f32 %v828, 6.0
          %v861 = vmin.f32 %v829, 6.0
          %v862 = vpack.c.bf16 %v830, %v830
          %v863 = vpack.c.bf16 %v831, %v831
          %v864 = vpack.c.bf16 %v832, %v832
          %v865 = vpack.c.bf16 %v833, %v833
          %v866 = vpack.c.bf16 %v834, %v834
          %v867 = vpack.c.bf16 %v835, %v835
          %v868 = vpack.c.bf16 %v836, %v836
          %v869 = vpack.c.bf16 %v837, %v837
          %v870 = vpack.c.bf16 %v838, %v838
          %v871 = vpack.c.bf16 %v839, %v839
          %v872 = vpack.c.bf16 %v840, %v840
          %v873 = vpack.c.bf16 %v841, %v841
          %v874 = vpack.c.bf16 %v842, %v842
          %v875 = vpack.c.bf16 %v843, %v843
          %v876 = vpack.c.bf16 %v844, %v844
          %v877 = vpack.c.bf16 %v845, %v845
          %v878 = vpack.c.bf16 %v846, %v846
          %v879 = vpack.c.bf16 %v847, %v847
          %v880 = vpack.c.bf16 %v848, %v848
          %v881 = vpack.c.bf16 %v849, %v849
          %v882 = vpack.c.bf16 %v850, %v850
          %v883 = vpack.c.bf16 %v851, %v851
          %v884 = vpack.c.bf16 %v852, %v852
          %v885 = vpack.c.bf16 %v853, %v853
          %v886 = vpack.c.bf16 %v854, %v854
          %v887 = vpack.c.bf16 %v855, %v855
          %v888 = vpack.c.bf16 %v856, %v856
          %v889 = vpack.c.bf16 %v857, %v857
          %v890 = vpack.c.bf16 %v858, %v858
          %v891 = vpack.c.bf16 %v859, %v859
          %v892 = vpack.c.bf16 %v860, %v860
          %v893 = vpack.c.bf16 %v861, %v861
          %894 = vst [vmem:[%s266] sm:$0xf] %v862
          %895 = vst [vmem:[%s266 + $0x4] sm:$0xf] %v863
          %896 = vst [vmem:[%s266 + $0x8] sm:$0xf] %v864
          %897 = vst [vmem:[%s266 + $0xc] sm:$0xf] %v865
          %898 = vst [vmem:[%s266 + $0x10] sm:$0xf] %v866
          %899 = vst [vmem:[%s266 + $0x14] sm:$0xf] %v867
          %900 = vst [vmem:[%s266 + $0x18] sm:$0xf] %v868
          %901 = vst [vmem:[%s266 + $0x1c] sm:$0xf] %v869
          %902 = vst [vmem:[%s266 + $0x20] sm:$0xf] %v870
          %903 = vst [vmem:[%s266 + $0x24] sm:$0xf] %v871
          %904 = vst [vmem:[%s266 + $0x28] sm:$0xf] %v872
          %905 = vst [vmem:[%s266 + $0x2c] sm:$0xf] %v873
          %906 = vst [vmem:[%s266 + $0x30] sm:$0xf] %v874
          %907 = vst [vmem:[%s266 + $0x34] sm:$0xf] %v875
          %908 = vst [vmem:[%s266 + $0x38] sm:$0xf] %v876
          %909 = vst [vmem:[%s266 + $0x3c] sm:$0xf] %v877
          %910 = vst [vmem:[%s266 + $0x40] sm:$0xf] %v878
          %911 = vst [vmem:[%s266 + $0x44] sm:$0xf] %v879
          %912 = vst [vmem:[%s266 + $0x48] sm:$0xf] %v880
          %913 = vst [vmem:[%s266 + $0x4c] sm:$0xf] %v881
          %914 = vst [vmem:[%s266 + $0x50] sm:$0xf] %v882
          %915 = vst [vmem:[%s266 + $0x54] sm:$0xf] %v883
          %916 = vst [vmem:[%s266 + $0x58] sm:$0xf] %v884
          %917 = vst [vmem:[%s266 + $0x5c] sm:$0xf] %v885
          %918 = vst [vmem:[%s266 + $0x60] sm:$0xf] %v886
          %919 = vst [vmem:[%s266 + $0x64] sm:$0xf] %v887
          %920 = vst [vmem:[%s266 + $0x68] sm:$0xf] %v888
          %921 = vst [vmem:[%s266 + $0x6c] sm:$0xf] %v889
          %922 = vst [vmem:[%s266 + $0x70] sm:$0xf] %v890
          %923 = vst [vmem:[%s266 + $0x74] sm:$0xf] %v891
          %924 = vst [vmem:[%s266 + $0x78] sm:$0xf] %v892
          %925 = vst [vmem:[%s266 + $0x7c] sm:$0xf] %v893
        $region44: #{tpu_custom_call.1} parent=35 // pred_fallthru
          _
        %s926 = sand.u32 %s155, 1
        %s927 = scalar_lea.sflag [#allocation4], %s926
        %s928 = sand.u32 %s155, 1
        %s929 = smul.addr %s928, 128
        %s930 = scalar_lea.vmem [#allocation3], %s929
        // Predicated region
        $region45: #{tpu_custom_call.1} parent=35 // pred_check
          %p931 = pneg %p165
        $region46: #{tpu_custom_call.1} parent=35 // pred_check_branch
          %933 = sbr.rel (%p931) target = $region48
        $region47: #{tpu_custom_call.1} parent=35 // pred_region
          %s934 = smul.u32 32, %s23
          %936 = vsyncadd %s927, 0
          %s937 = sadd.s32 %s24, %s934
          %s938 = smul.addr %s937, 4
          %s939 = scalar_lea.hbm %s4, %s938
          %s940 = sshll.u32 %s930, 4
          %s941 = int_to_ptr.vmem [resolvable:$true] %s940
          %s942 = sshll.u32 %s939, 4
          %s943 = int_to_ptr.hbm [resolvable:$true] %s942
          %948 = dma.vmem_to_hbm [thread:$0]  %s941, 2048, %s943, %s927, 64, 64, 4
        $region48: #{tpu_custom_call.1} parent=35 // pred_fallthru
          _
      $region36: #{tpu_custom_call.1} parent=5 // pred_fallthru
        _
      %p949 = scmp.le.s32.totalorder 2, %s13
      // Predicated region
      $region49: #{tpu_custom_call.1} parent=5 // pred_check
        %p950 = pneg %p949
      $region50: #{tpu_custom_call.1} parent=5 // pred_check_branch
        %952 = sbr.rel (%p950) target = $region52
      $region51: #{tpu_custom_call.1} parent=5 // pred_region
        %s953 = ssub.s32 %s13, 2
        // Predicated region
        $region53: #{tpu_custom_call.1} parent=51 // pred_check
          %p954 = pneg %p171
        $region54: #{tpu_custom_call.1} parent=51 // pred_check_branch
          %956 = sbr.rel (%p954) target = $region56
        $region55: #{tpu_custom_call.1} parent=51 // pred_region
          %s957 = sand.u32 %s156, 1
          %s958 = scalar_lea.sflag [#allocation4], %s957
          %s959 = sand.u32 %s156, 1
          %s960 = smul.addr %s959, 128
          %s961 = scalar_lea.vmem [#allocation3], %s960
          %963 = dma.done %s958, 2048
        $region56: #{tpu_custom_call.1} parent=51 // pred_fallthru
          _
      $region52: #{tpu_custom_call.1} parent=5 // pred_fallthru
        _
    $region6: #{tpu_custom_call.1} parent=1 // loop_footer
      %s17 = sadd.s32 1, %s13
    $region7: #{tpu_custom_call.1} parent=1 // loop_footer_branch
      %12 = sbr.rel target = $region3
    $region8: #{tpu_custom_call.1} parent=1 // loop_exit
      _
    %964 = vsyncpa [#allocation4], 1
    %s965 = scalar_lea.sflag [#allocation4], 1
    %966 = vsyncpa %s965, 1

</llo_original>
